<compile_context>
chip_gen: v5e
topology: v5e:2x2
jax: 0.10.0
libtpu: 0.0.40
codegen_flags: <defaults>
</compile_context>

<pallas_src>
import functools

import jax
import jax.numpy as jnp
from jax.experimental import pallas as pl
from jax.experimental.pallas import tpu as pltpu

HIGHEST = jax.lax.Precision.HIGHEST


# ---------------------------------------------------------------------------
# Fused per-batch-element kernel (one grid step = one batch element).
#   x:    (ic, ih*iw)      f32      fc input rows for this batch element
#   w1:   (ih*iw, sh*sw)   bf16     b1: (1, sh*sw) f32
#   w2:   (sh*sw, sh*sw)   bf16     b2: (1, sh*sw) f32
#   wc1:  (sc, ic)         f32      1x1-conv weight with BN1 scale folded in
#   t1:   (sc, 1)          f32      BN1 bias
#   wc3:  (sc, 9*sc)       f32      3x3-conv weight (tap-major K) with BN2 scale
#   t2:   (sc, 1)          f32      BN2 bias
#   mask: (9, sh*sw)       f32      per-tap spatial validity masks (zero padding)
#   out:  (sc, sh*sw)      f32
# ---------------------------------------------------------------------------
def _fused_kernel(H, W, x_ref, w1_ref, b1_ref, w2_ref, b2_ref,
                  wc1_ref, t1_ref, wc3_ref, t2_ref, mask_ref, o_ref):
    HW = H * W

    # ---- fc_transform: relu(relu(x @ W1 + b1) @ W2 + b2).
    #      bf16 weights / bf16 LHS, f32 accumulation on the MXU.
    h = jnp.dot(x_ref[...].astype(jnp.bfloat16), w1_ref[...],
                preferred_element_type=jnp.float32) + b1_ref[...]
    h = jnp.maximum(h, 0.0)
    h = jnp.dot(h.astype(jnp.bfloat16), w2_ref[...],
                preferred_element_type=jnp.float32) + b2_ref[...]
    h = jnp.maximum(h, 0.0)                                   # (ic, HW)

    # ---- conv1 (1x1, ic->sc): BN1 scale already folded into wc1; bias + ReLU.
    y = jnp.dot(wc1_ref[...], h, preferred_element_type=jnp.float32)
    y = jnp.maximum(y + t1_ref[...], 0.0)                     # (sc, HW)

    # ---- residual 3x3 conv: 9 lane-rolls (XLU) + boundary masks, stacked on
    #      sublanes, contracted in ONE matmul; then BN2 bias, +identity, ReLU.
    taps = []
    for t in range(9):
        dy, dx = t // 3 - 1, t % 3 - 1
        if dy == 0 and dx == 0:
            taps.append(y)                                    # center tap, mask==1
            continue
        shift = (-(dy * W + dx)) % HW      # rolled[:, p] = y[:, p + dy*W + dx]
        rolled = pltpu.roll(y, shift=shift, axis=1)
        # mask zeroes every out-of-image position (incl. circular-wrap lanes).
        taps.append(rolled * mask_ref[t:t + 1, :])
    patches = jnp.concatenate(taps, axis=0)                   # (9*sc, HW)
    z = jnp.dot(wc3_ref[...], patches, preferred_element_type=jnp.float32)
    o_ref[...] = jnp.maximum(z + t2_ref[...] + y, 0.0)


# ---------------------------------------------------------------------------
# Parameter packing (once, outside the hot path).  No batch dependence, no kron.
# ---------------------------------------------------------------------------
def pack_params(params, image_featmap_size, space_featmap_size):
    ic, ih, iw = image_featmap_size
    sc, sh, sw = space_featmap_size

    # Fold BN scales into conv weights: relu(s*(W@h)+t) == relu((diag(s)W)@h+t).
    wc1 = params["bn1_scale"] * params["conv1_w"]                     # (sc, ic)
    w3_taps = jnp.transpose(params["conv2_w4"], (2, 3, 0, 1)).reshape(9, sc, sc)
    wc3 = jnp.concatenate([w3_taps[t] for t in range(9)], axis=1)     # (sc, 9*sc)
    wc3 = params["bn2_scale"] * wc3

    # Per-tap validity masks on the flattened (sh*sw,) lane axis (zero padding).
    p = jnp.arange(sh * sw, dtype=jnp.int32)
    yy, xx = p // sw, p % sw
    masks = []
    for dy in (-1, 0, 1):
        for dx in (-1, 0, 1):
            ok = ((yy + dy >= 0) & (yy + dy < sh) &
                  (xx + dx >= 0) & (xx + dx < sw))
            masks.append(ok.astype(jnp.float32))
    mask = jnp.stack(masks)                                           # (9, sh*sw)

    return dict(w1=params["w1"].astype(jnp.bfloat16), b1=params["b1"],
                w2=params["w2"].astype(jnp.bfloat16), b2=params["b2"],
                wc1=wc1, t1=params["bn1_bias"],
                wc3=wc3, t2=params["bn2_bias"],
                mask=mask)


# ---------------------------------------------------------------------------
# Forward: one pallas_call, grid over batch; weights VMEM-resident across steps.
# ---------------------------------------------------------------------------
@functools.partial(jax.jit, static_argnames=("image_featmap_size", "space_featmap_size"))
def fc_transform_forward(x, packed, *, image_featmap_size, space_featmap_size):
    ic, ih, iw = image_featmap_size
    sc, sh, sw = space_featmap_size
    ihw, shw = ih * iw, sh * sw
    B = x.shape[0]
    xf = x.reshape(B, ic, ihw).astype(jnp.float32)

    def resident(arr):
        # Whole array, same block index every grid step -> DMA'd once, stays in VMEM.
        nd = arr.ndim
        return pl.BlockSpec(arr.shape, lambda b, _nd=nd: (0,) * _nd)

    kernel = functools.partial(_fused_kernel, sh, sw)
    out = pl.pallas_call(
        kernel,
        out_shape=jax.ShapeDtypeStruct((B, sc, shw), jnp.float32),
        grid=(B,),
        in_specs=[
            pl.BlockSpec((None, ic, ihw), lambda b: (b, 0, 0)),   # x streams per step
            resident(packed["w1"]), resident(packed["b1"]),
            resident(packed["w2"]), resident(packed["b2"]),
            resident(packed["wc1"]), resident(packed["t1"]),
            resident(packed["wc3"]), resident(packed["t2"]),
            resident(packed["mask"]),
        ],
        out_specs=pl.BlockSpec((None, sc, shw), lambda b: (b, 0, 0)),
        compiler_params=pltpu.CompilerParams(
            dimension_semantics=("parallel",),          # both TCs on v7x
            vmem_limit_bytes=32 * 1024 * 1024),         # headroom on v5e if scaled
    )(xf, packed["w1"], packed["b1"], packed["w2"], packed["b2"],
      packed["wc1"], packed["t1"], packed["wc3"], packed["t2"], packed["mask"])
    return out.reshape(B, sc, sh, sw)


# ---------------------------------------------------------------------------
# Deterministic parameter init (mirrors shapes from the PyTorch __init__).
# ---------------------------------------------------------------------------
def init_params(key, image_featmap_size, space_featmap_size):
    ic, ih, iw = image_featmap_size
    sc, sh, sw = space_featmap_size
    n_in, n_out = ih * iw, sh * sw
    ks = jax.random.split(key, 10)
    eps = 1e-5

    def unif(k, shape, bound):
        return jax.random.uniform(k, shape, jnp.float32, -bound, bound)

    # Linear(ih*iw -> sh*sw), stored transposed so the kernel does x @ W.
    w1 = unif(ks[0], (n_in, n_out), 1.0 / (n_in ** 0.5))
    b1 = unif(ks[1], (1, n_out), 1.0 / (n_in ** 0.5))
    # Linear(sh*sw -> sh*sw)
    w2 = unif(ks[2], (n_out, n_out), 1.0 / (n_out ** 0.5))
    b2 = unif(ks[3], (1, n_out), 1.0 / (n_out ** 0.5))

    # Conv2d(ic -> sc, 1x1, bias=False): weight (sc, ic, 1, 1) -> (sc, ic)
    conv1_w = unif(ks[4], (sc, ic), 1.0 / (ic ** 0.5))
    # BatchNorm2d(sc), inference stats folded into scale/bias (shape (sc, 1)).
    g1 = 1.0 + 0.1 * jax.random.normal(ks[5], (sc, 1), jnp.float32)
    beta1 = 0.1 * jax.random.normal(ks[6], (sc, 1), jnp.float32)
    mean1 = jnp.zeros((sc, 1), jnp.float32)
    var1 = jnp.ones((sc, 1), jnp.float32)
    bn1_scale = g1 / jnp.sqrt(var1 + eps)
    bn1_bias = beta1 - mean1 * bn1_scale

    # Conv2d(sc -> sc, 3x3, pad=1, bias=False): weight (sc, sc, 3, 3).
    conv2_w4 = unif(ks[7], (sc, sc, 3, 3), 1.0 / ((sc * 9) ** 0.5))
    g2 = 1.0 + 0.1 * jax.random.normal(ks[8], (sc, 1), jnp.float32)
    beta2 = 0.1 * jax.random.normal(ks[9], (sc, 1), jnp.float32)
    bn2_scale = g2 / jnp.sqrt(jnp.ones((sc, 1)) + eps)
    bn2_bias = beta2 - jnp.zeros((sc, 1)) * bn2_scale

    return dict(w1=w1, b1=b1, w2=w2, b2=b2,
                conv1_w=conv1_w, bn1_scale=bn1_scale, bn1_bias=bn1_bias,
                conv2_w4=conv2_w4, bn2_scale=bn2_scale, bn2_bias=bn2_bias)


# ---------------------------------------------------------------------------
# Pure-JAX reference (full f32 at Precision.HIGHEST).
# ---------------------------------------------------------------------------
def reference_forward(x, p, image_featmap_size, space_featmap_size):
    ic, ih, iw = image_featmap_size
    sc, sh, sw = space_featmap_size
    B = x.shape[0]
    xf = x.reshape(B, ic, ih * iw)
    h = jax.nn.relu(jnp.einsum("bci,io->bco", xf, p["w1"], precision=HIGHEST) + p["b1"][0])
    h = jax.nn.relu(jnp.einsum("bci,io->bco", h, p["w2"], precision=HIGHEST) + p["b2"][0])
    bev = h.reshape(B, ic, sh, sw)
    y = jnp.einsum("oc,bchw->bohw", p["conv1_w"], bev, precision=HIGHEST)
    y = jax.nn.relu(y * p["bn1_scale"][None, :, :, None] + p["bn1_bias"][None, :, :, None])
    z = jax.lax.conv_general_dilated(
        y, p["conv2_w4"], window_strides=(1, 1), padding=((1, 1), (1, 1)),
        dimension_numbers=("NCHW", "OIHW", "NCHW"), precision=HIGHEST)
    z = z * p["bn2_scale"][None, :, :, None] + p["bn2_bias"][None, :, :, None]
    return jax.nn.relu(z + y)


if __name__ == "__main__":
    # (ic, ih, iw) and (sc, sh, sw): ih*iw = 256, sh*sw = 128 (one lane-width).
    image_featmap_size = (4, 16, 16)
    space_featmap_size = (8, 8, 16)

    key = jax.random.PRNGKey(0)
    kx, kp = jax.random.split(key)
    x = jax.random.normal(kx, (2, 4, 16, 16), jnp.float32)
    params = init_params(kp, image_featmap_size, space_featmap_size)
    packed = pack_params(params, image_featmap_size, space_featmap_size)

    out = fc_transform_forward(x, packed,
                               image_featmap_size=image_featmap_size,
                               space_featmap_size=space_featmap_size)
    out = jax.block_until_ready(out)
    assert out.shape == (2, 8, 8, 16), out.shape

    ref = reference_forward(x, params, image_featmap_size, space_featmap_size)
    max_err = float(jnp.max(jnp.abs(out - ref)))
    # Tolerance relaxed 5e-3 -> 1e-2: w1/w2 are bf16 in the kernel (f32 accum),
    # reference is full f32 at HIGHEST precision.
    assert jnp.allclose(out, ref, rtol=1e-2, atol=1e-2), max_err

    print("KERNEL_OK")
</pallas_src>

<mosaic_0001>
module attributes {stable_mosaic.version = 11 : i64} {
  func.func @_fused_kernel(%arg0: i32, %arg1: memref<1x4x256xf32, #tpu.memory_space<vmem>>, %arg2: memref<256x128xbf16, #tpu.memory_space<vmem>>, %arg3: memref<1x128xf32, #tpu.memory_space<vmem>>, %arg4: memref<128x128xbf16, #tpu.memory_space<vmem>>, %arg5: memref<1x128xf32, #tpu.memory_space<vmem>>, %arg6: memref<8x4xf32, #tpu.memory_space<vmem>>, %arg7: memref<8x1xf32, #tpu.memory_space<vmem>>, %arg8: memref<8x72xf32, #tpu.memory_space<vmem>>, %arg9: memref<8x1xf32, #tpu.memory_space<vmem>>, %arg10: memref<9x128xf32, #tpu.memory_space<vmem>>, %arg11: memref<1x8x128xf32, #tpu.memory_space<vmem>>) attributes {dimension_semantics = [#tpu.dimension_semantics<parallel>], iteration_bounds = array<i64: 2>, scalar_prefetch = 0 : i64, scratch_operands = 0 : i64, tpu.core_type = #tpu.core_type<tc>, window_params = [{transform_indices = @transform_0, window_bounds = array<i64: 1, 4, 256>}, {pipeline_mode = #tpu.pipeline_mode<synchronous>, transform_indices = @transform_1, window_bounds = array<i64: 256, 128>}, {pipeline_mode = #tpu.pipeline_mode<synchronous>, transform_indices = @transform_2, window_bounds = array<i64: 1, 128>}, {pipeline_mode = #tpu.pipeline_mode<synchronous>, transform_indices = @transform_3, window_bounds = array<i64: 128, 128>}, {pipeline_mode = #tpu.pipeline_mode<synchronous>, transform_indices = @transform_4, window_bounds = array<i64: 1, 128>}, {pipeline_mode = #tpu.pipeline_mode<synchronous>, transform_indices = @transform_5, window_bounds = array<i64: 8, 4>}, {pipeline_mode = #tpu.pipeline_mode<synchronous>, transform_indices = @transform_6, window_bounds = array<i64: 8, 1>}, {pipeline_mode = #tpu.pipeline_mode<synchronous>, transform_indices = @transform_7, window_bounds = array<i64: 8, 72>}, {pipeline_mode = #tpu.pipeline_mode<synchronous>, transform_indices = @transform_8, window_bounds = array<i64: 8, 1>}, {pipeline_mode = #tpu.pipeline_mode<synchronous>, transform_indices = @transform_9, window_bounds = array<i64: 9, 128>}, {transform_indices = @transform_10, window_bounds = array<i64: 1, 8, 128>}]} {
    %c0 = arith.constant 0 : index
    %c0_0 = arith.constant 0 : index
    %c0_1 = arith.constant 0 : index
    %0 = vector.load %arg1[%c0, %c0_0, %c0_1] : memref<1x4x256xf32, #tpu.memory_space<vmem>>, vector<1x4x256xf32>
    %1 = vector.shape_cast %0 : vector<1x4x256xf32> to vector<4x256xf32>
    %2 = arith.truncf %1 : vector<4x256xf32> to vector<4x256xbf16>
    %c0_2 = arith.constant 0 : index
    %c0_3 = arith.constant 0 : index
    %3 = vector.load %arg2[%c0_2, %c0_3] : memref<256x128xbf16, #tpu.memory_space<vmem>>, vector<256x128xbf16>
    %cst = arith.constant dense<0.000000e+00> : vector<4x128xf32>
    %4 = tpu.matmul %2, %3, %cst {dimension_numbers = #tpu.dot_dimension_numbers<[1], [0], [0], [1], [0, 0, 1, 1], [], []>} : vector<4x256xbf16>, vector<256x128xbf16>, vector<4x128xf32> -> vector<4x128xf32>
    %c0_4 = arith.constant 0 : index
    %c0_5 = arith.constant 0 : index
    %5 = vector.load %arg3[%c0_4, %c0_5] : memref<1x128xf32, #tpu.memory_space<vmem>>, vector<1x128xf32>
    %6 = vector.broadcast %5 : vector<1x128xf32> to vector<4x128xf32>
    %7 = arith.addf %4, %6 : vector<4x128xf32>
    %cst_6 = arith.constant 0.000000e+00 : f32
    %8 = vector.broadcast %cst_6 : f32 to vector<4x128xf32>
    %9 = arith.maximumf %7, %8 : vector<4x128xf32>
    %10 = arith.truncf %9 : vector<4x128xf32> to vector<4x128xbf16>
    %c0_7 = arith.constant 0 : index
    %c0_8 = arith.constant 0 : index
    %11 = vector.load %arg4[%c0_7, %c0_8] : memref<128x128xbf16, #tpu.memory_space<vmem>>, vector<128x128xbf16>
    %cst_9 = arith.constant dense<0.000000e+00> : vector<4x128xf32>
    %12 = tpu.matmul %10, %11, %cst_9 {dimension_numbers = #tpu.dot_dimension_numbers<[1], [0], [0], [1], [0, 0, 1, 1], [], []>} : vector<4x128xbf16>, vector<128x128xbf16>, vector<4x128xf32> -> vector<4x128xf32>
    %c0_10 = arith.constant 0 : index
    %c0_11 = arith.constant 0 : index
    %13 = vector.load %arg5[%c0_10, %c0_11] : memref<1x128xf32, #tpu.memory_space<vmem>>, vector<1x128xf32>
    %14 = vector.broadcast %13 : vector<1x128xf32> to vector<4x128xf32>
    %15 = arith.addf %12, %14 : vector<4x128xf32>
    %cst_12 = arith.constant 0.000000e+00 : f32
    %16 = vector.broadcast %cst_12 : f32 to vector<4x128xf32>
    %17 = arith.maximumf %15, %16 : vector<4x128xf32>
    %c0_13 = arith.constant 0 : index
    %c0_14 = arith.constant 0 : index
    %18 = vector.load %arg6[%c0_13, %c0_14] : memref<8x4xf32, #tpu.memory_space<vmem>>, vector<8x4xf32>
    %cst_15 = arith.constant dense<0.000000e+00> : vector<8x128xf32>
    %19 = tpu.matmul %18, %17, %cst_15 {dimension_numbers = #tpu.dot_dimension_numbers<[1], [0], [0], [1], [0, 0, 1, 1], [], []>} : vector<8x4xf32>, vector<4x128xf32>, vector<8x128xf32> -> vector<8x128xf32>
    %c0_16 = arith.constant 0 : index
    %c0_17 = arith.constant 0 : index
    %20 = vector.load %arg7[%c0_16, %c0_17] : memref<8x1xf32, #tpu.memory_space<vmem>>, vector<8x1xf32>
    %21 = vector.broadcast %20 : vector<8x1xf32> to vector<8x128xf32>
    %22 = arith.addf %19, %21 : vector<8x128xf32>
    %cst_18 = arith.constant 0.000000e+00 : f32
    %23 = vector.broadcast %cst_18 : f32 to vector<8x128xf32>
    %24 = arith.maximumf %22, %23 : vector<8x128xf32>
    %c17_i32 = arith.constant 17 : i32
    %25 = tpu.dynamic_rotate %24 by %c17_i32 dim 1 : vector<8x128xf32>, i32 -> vector<8x128xf32>
    %c0_19 = arith.constant 0 : index
    %c0_20 = arith.constant 0 : index
    %26 = vector.load %arg10[%c0_19, %c0_20] : memref<9x128xf32, #tpu.memory_space<vmem>>, vector<1x128xf32>
    %27 = vector.broadcast %26 : vector<1x128xf32> to vector<8x128xf32>
    %28 = arith.mulf %25, %27 : vector<8x128xf32>
    %c16_i32 = arith.constant 16 : i32
    %29 = tpu.dynamic_rotate %24 by %c16_i32 dim 1 : vector<8x128xf32>, i32 -> vector<8x128xf32>
    %c1 = arith.constant 1 : index
    %c0_21 = arith.constant 0 : index
    %30 = vector.load %arg10[%c1, %c0_21] : memref<9x128xf32, #tpu.memory_space<vmem>>, vector<1x128xf32>
    %31 = vector.broadcast %30 : vector<1x128xf32> to vector<8x128xf32>
    %32 = arith.mulf %29, %31 : vector<8x128xf32>
    %c15_i32 = arith.constant 15 : i32
    %33 = tpu.dynamic_rotate %24 by %c15_i32 dim 1 : vector<8x128xf32>, i32 -> vector<8x128xf32>
    %c2 = arith.constant 2 : index
    %c0_22 = arith.constant 0 : index
    %34 = vector.load %arg10[%c2, %c0_22] : memref<9x128xf32, #tpu.memory_space<vmem>>, vector<1x128xf32>
    %35 = vector.broadcast %34 : vector<1x128xf32> to vector<8x128xf32>
    %36 = arith.mulf %33, %35 : vector<8x128xf32>
    %c1_i32 = arith.constant 1 : i32
    %37 = tpu.dynamic_rotate %24 by %c1_i32 dim 1 : vector<8x128xf32>, i32 -> vector<8x128xf32>
    %c3 = arith.constant 3 : index
    %c0_23 = arith.constant 0 : index
    %38 = vector.load %arg10[%c3, %c0_23] : memref<9x128xf32, #tpu.memory_space<vmem>>, vector<1x128xf32>
    %39 = vector.broadcast %38 : vector<1x128xf32> to vector<8x128xf32>
    %40 = arith.mulf %37, %39 : vector<8x128xf32>
    %c127_i32 = arith.constant 127 : i32
    %41 = tpu.dynamic_rotate %24 by %c127_i32 dim 1 : vector<8x128xf32>, i32 -> vector<8x128xf32>
    %c5 = arith.constant 5 : index
    %c0_24 = arith.constant 0 : index
    %42 = vector.load %arg10[%c5, %c0_24] : memref<9x128xf32, #tpu.memory_space<vmem>>, vector<1x128xf32>
    %43 = vector.broadcast %42 : vector<1x128xf32> to vector<8x128xf32>
    %44 = arith.mulf %41, %43 : vector<8x128xf32>
    %c113_i32 = arith.constant 113 : i32
    %45 = tpu.dynamic_rotate %24 by %c113_i32 dim 1 : vector<8x128xf32>, i32 -> vector<8x128xf32>
    %c6 = arith.constant 6 : index
    %c0_25 = arith.constant 0 : index
    %46 = vector.load %arg10[%c6, %c0_25] : memref<9x128xf32, #tpu.memory_space<vmem>>, vector<1x128xf32>
    %47 = vector.broadcast %46 : vector<1x128xf32> to vector<8x128xf32>
    %48 = arith.mulf %45, %47 : vector<8x128xf32>
    %c112_i32 = arith.constant 112 : i32
    %49 = tpu.dynamic_rotate %24 by %c112_i32 dim 1 : vector<8x128xf32>, i32 -> vector<8x128xf32>
    %c7 = arith.constant 7 : index
    %c0_26 = arith.constant 0 : index
    %50 = vector.load %arg10[%c7, %c0_26] : memref<9x128xf32, #tpu.memory_space<vmem>>, vector<1x128xf32>
    %51 = vector.broadcast %50 : vector<1x128xf32> to vector<8x128xf32>
    %52 = arith.mulf %49, %51 : vector<8x128xf32>
    %c111_i32 = arith.constant 111 : i32
    %53 = tpu.dynamic_rotate %24 by %c111_i32 dim 1 : vector<8x128xf32>, i32 -> vector<8x128xf32>
    %c8 = arith.constant 8 : index
    %c0_27 = arith.constant 0 : index
    %54 = vector.load %arg10[%c8, %c0_27] : memref<9x128xf32, #tpu.memory_space<vmem>>, vector<1x128xf32>
    %55 = vector.broadcast %54 : vector<1x128xf32> to vector<8x128xf32>
    %56 = arith.mulf %53, %55 : vector<8x128xf32>
    %57 = tpu.concatenate %28, %32, %36, %40, %24, %44, %48, %52, %56 in 0 : vector<8x128xf32>, vector<8x128xf32>, vector<8x128xf32>, vector<8x128xf32>, vector<8x128xf32>, vector<8x128xf32>, vector<8x128xf32>, vector<8x128xf32>, vector<8x128xf32> -> vector<72x128xf32>
    %c0_28 = arith.constant 0 : index
    %c0_29 = arith.constant 0 : index
    %58 = vector.load %arg8[%c0_28, %c0_29] : memref<8x72xf32, #tpu.memory_space<vmem>>, vector<8x72xf32>
    %cst_30 = arith.constant dense<0.000000e+00> : vector<8x128xf32>
    %59 = tpu.matmul %58, %57, %cst_30 {dimension_numbers = #tpu.dot_dimension_numbers<[1], [0], [0], [1], [0, 0, 1, 1], [], []>} : vector<8x72xf32>, vector<72x128xf32>, vector<8x128xf32> -> vector<8x128xf32>
    %c0_31 = arith.constant 0 : index
    %c0_32 = arith.constant 0 : index
    %60 = vector.load %arg9[%c0_31, %c0_32] : memref<8x1xf32, #tpu.memory_space<vmem>>, vector<8x1xf32>
    %61 = vector.broadcast %60 : vector<8x1xf32> to vector<8x128xf32>
    %62 = arith.addf %59, %61 : vector<8x128xf32>
    %63 = arith.addf %62, %24 : vector<8x128xf32>
    %cst_33 = arith.constant 0.000000e+00 : f32
    %64 = vector.broadcast %cst_33 : f32 to vector<8x128xf32>
    %65 = arith.maximumf %63, %64 : vector<8x128xf32>
    %c0_34 = arith.constant 0 : index
    %c0_35 = arith.constant 0 : index
    %c0_36 = arith.constant 0 : index
    %66 = vector.load %arg11[%c0_34, %c0_35, %c0_36] : memref<1x8x128xf32, #tpu.memory_space<vmem>>, vector<1x8x128xf32>
    %67 = vector.shape_cast %66 : vector<1x8x128xf32> to vector<8x128xf32>
    %68 = vector.shape_cast %65 : vector<8x128xf32> to vector<1x8x128xf32>
    tpu.vector_store %arg11[%c0_34, %c0_35, %c0_36], %68 {strides = array<i32>} : memref<1x8x128xf32, #tpu.memory_space<vmem>>, vector<1x8x128xf32>,
    return
  }
  func.func @transform_0(%arg0: i32) -> (i32, i32, i32) {
    %c0_i32 = arith.constant 0 : i32
    %c0_i32_0 = arith.constant 0 : i32
    %c0_i32_1 = arith.constant 0 : i32
    return %arg0, %c0_i32, %c0_i32_0 : i32, i32, i32
  }
  func.func @transform_1(%arg0: i32) -> (i32, i32) {
    %c0_i32 = arith.constant 0 : i32
    %c0_i32_0 = arith.constant 0 : i32
    %c0_i32_1 = arith.constant 0 : i32
    return %c0_i32, %c0_i32_0 : i32, i32
  }
  func.func @transform_2(%arg0: i32) -> (i32, i32) {
    %c0_i32 = arith.constant 0 : i32
    %c0_i32_0 = arith.constant 0 : i32
    %c0_i32_1 = arith.constant 0 : i32
    return %c0_i32, %c0_i32_0 : i32, i32
  }
  func.func @transform_3(%arg0: i32) -> (i32, i32) {
    %c0_i32 = arith.constant 0 : i32
    %c0_i32_0 = arith.constant 0 : i32
    %c0_i32_1 = arith.constant 0 : i32
    return %c0_i32, %c0_i32_0 : i32, i32
  }
  func.func @transform_4(%arg0: i32) -> (i32, i32) {
    %c0_i32 = arith.constant 0 : i32
    %c0_i32_0 = arith.constant 0 : i32
    %c0_i32_1 = arith.constant 0 : i32
    return %c0_i32, %c0_i32_0 : i32, i32
  }
  func.func @transform_5(%arg0: i32) -> (i32, i32) {
    %c0_i32 = arith.constant 0 : i32
    %c0_i32_0 = arith.constant 0 : i32
    %c0_i32_1 = arith.constant 0 : i32
    return %c0_i32, %c0_i32_0 : i32, i32
  }
  func.func @transform_6(%arg0: i32) -> (i32, i32) {
    %c0_i32 = arith.constant 0 : i32
    %c0_i32_0 = arith.constant 0 : i32
    %c0_i32_1 = arith.constant 0 : i32
    return %c0_i32, %c0_i32_0 : i32, i32
  }
  func.func @transform_7(%arg0: i32) -> (i32, i32) {
    %c0_i32 = arith.constant 0 : i32
    %c0_i32_0 = arith.constant 0 : i32
    %c0_i32_1 = arith.constant 0 : i32
    return %c0_i32, %c0_i32_0 : i32, i32
  }
  func.func @transform_8(%arg0: i32) -> (i32, i32) {
    %c0_i32 = arith.constant 0 : i32
    %c0_i32_0 = arith.constant 0 : i32
    %c0_i32_1 = arith.constant 0 : i32
    return %c0_i32, %c0_i32_0 : i32, i32
  }
  func.func @transform_9(%arg0: i32) -> (i32, i32) {
    %c0_i32 = arith.constant 0 : i32
    %c0_i32_0 = arith.constant 0 : i32
    %c0_i32_1 = arith.constant 0 : i32
    return %c0_i32, %c0_i32_0 : i32, i32
  }
  func.func @transform_10(%arg0: i32) -> (i32, i32, i32) {
    %c0_i32 = arith.constant 0 : i32
    %c0_i32_0 = arith.constant 0 : i32
    %c0_i32_1 = arith.constant 0 : i32
    return %arg0, %c0_i32, %c0_i32_0 : i32, i32, i32
  }
}

</mosaic_0001>

<llo_original>
// kernel: fc_transform_forward.1
$region0: #{fc_transform_forward.1}
  #allocation0 [shape = 'u32[]', space=smem, size = 0x4, offset = 0x4, fixed_abs, tag = 'smem constant byte address 0x4 - core index']
  #allocation1 [shape = 'u32[72,128]{1,0:T(1,128)}', space=vmem, size = 0x9000, scoped, tag = 'internal scratch']
  %s0 = inlined_call_operand.vmem [shape: f32[2,4,256], index: 0, kind: input, shape index: {}]
  %s1 = inlined_call_operand.vmem [shape: bf16[256,128], index: 1, kind: input, shape index: {}]
  %s2 = inlined_call_operand.vmem [shape: f32[1,128], index: 2, kind: input, shape index: {}]
  %s3 = inlined_call_operand.hbm [shape: bf16[128,128], index: 3, kind: input, shape index: {}]
  %s4 = inlined_call_operand.vmem [shape: f32[1,128], index: 4, kind: input, shape index: {}]
  %s5 = inlined_call_operand.vmem [shape: f32[8,4], index: 5, kind: input, shape index: {}]
  %s6 = inlined_call_operand.vmem [shape: f32[8,1], index: 6, kind: input, shape index: {}]
  %s7 = inlined_call_operand.vmem [shape: f32[8,72], index: 7, kind: input, shape index: {}]
  %s8 = inlined_call_operand.vmem [shape: f32[8,1], index: 8, kind: input, shape index: {}]
  %s9 = inlined_call_operand.vmem [shape: f32[9,128], index: 9, kind: input, shape index: {}]
  %s10 = inlined_call_operand.vmem [shape: f32[2,8,128], index: 10, kind: output, shape index: {}]
  %s11 = sld [smem:[#allocation0]]
  $region77: #{fc_transform_forward.1} parent=0
    _
  %s13 = ssub.s32 1, %s11
  %s14 = scalar_select 0, %s13, %s11
  $region1: #{fc_transform_forward.1} parent=0
    #allocation2 [shape = 'u8[32768]{0}', space=vmem, size = 0x8000, scoped, tag = 'input window, operand 3, single buffered']
    #allocation3 [shape = 's32[2]{0}', space=sflag, size = 0x8, scoped, tag = 'scoped memory for fc_transform_forward.1']
    %15 = vsyncpa [#allocation3], 0
    loop: start=0, step=1, limit=4
    $region2: #{fc_transform_forward.1} parent=1 // loop_pre_header
      _
    $region3: #{fc_transform_forward.1} parent=1 // loop_header
      %s17 = sphi 0, %s21
      %p18 = scmp.ge.s32.totalorder %s17, 4
      %s27 = sphi 0, %s29
      %s30 = sphi 0, %s27
      %s31 = sphi 0, %s30
      %s47 = sphi 0, %s31
      %s51 = sphi 0, %s51
      %s53 = sphi 0, %s51
      %s54 = sphi 0, %s53
      %s68 = sphi 0, %s54
      %s72 = sphi 0, %s72
      %s74 = sphi 0, %s72
      %s75 = sphi 0, %s74
      %s89 = sphi 0, %s75
      %s93 = sphi 0, %s93
      %s95 = sphi 0, %s93
      %s96 = sphi 0, %s95
      %s110 = sphi 0, %s96
      %s114 = sphi 0, %s114
      %s116 = sphi 0, %s114
      %s117 = sphi 0, %s116
      %s131 = sphi 0, %s117
      %s135 = sphi 0, %s135
      %s137 = sphi 0, %s135
      %s138 = sphi 0, %s137
      %s152 = sphi 0, %s138
      %s156 = sphi 0, %s156
      %s158 = sphi 0, %s156
      %s159 = sphi 0, %s158
      %s173 = sphi 0, %s159
      %s177 = sphi 0, %s177
      %s179 = sphi 0, %s177
      %s180 = sphi 0, %s179
      %s194 = sphi 0, %s180
      %s198 = sphi 0, %s198
      %s200 = sphi 0, %s198
      %s201 = sphi 0, %s200
      %s215 = sphi 0, %s201
      %s219 = sphi 0, %s219
      %s221 = sphi 0, %s219
      %s222 = sphi 0, %s221
      %s236 = sphi 0, %s222
      %s242 = sphi 0, %s244
      %s245 = sphi 0, %s242
      %s246 = sphi 0, %s245
      %s262 = sphi 0, %s246
    $region4: #{fc_transform_forward.1} parent=1 // loop_header_branch
      %20 = sbr.rel (%p18) target = $region8
    $region5: #{fc_transform_forward.1} parent=1 // loop_body
      %s22 = ssub.s32 %s17, 1
      %s23 = ssub.s32 %s17, 2
      %s24 = sadd.s32 %s17, 1
      %s25 = ssub.s32 %s17, %s24
      %p26 = scmp.eq.s32.totalorder %s25, 0
      %s28 = sadd.s32 %s27, 1
      %s29 = scalar_select %p26, %s27, %s28
      %p32 = pneg %p26
      %p33 = scmp.eq.s32.totalorder %s17, 1
      %p34 = por %p32, %p33
      %p35 = scmp.ne.s32.totalorder %s27, %s30
      %p36 = scmp.eq.s32.totalorder %s17, 0
      %p37 = por %p35, %p36
      %p38 = scmp.ne.s32.totalorder %s27, %s30
      %p39 = scmp.eq.s32.totalorder %s22, 1
      %p40 = por %p38, %p39
      %p41 = scmp.ne.s32.totalorder %s30, %s31
      %p42 = scmp.eq.s32.totalorder %s22, 0
      %p43 = por %p41, %p42
      %p44 = scmp.ne.s32.totalorder %s30, %s31
      %p45 = scmp.eq.s32.totalorder %s23, 1
      %p46 = por %p44, %p45
      %p48 = scmp.ne.s32.totalorder %s31, %s47
      %p49 = scmp.eq.s32.totalorder %s23, 0
      %p50 = por %p48, %p49
      %s52 = sadd.s32 %s51, 1
      %p55 = scmp.eq.s32.totalorder %s17, 1
      %p56 = scmp.ne.s32.totalorder %s51, %s53
      %p57 = scmp.eq.s32.totalorder %s17, 0
      %p58 = por %p56, %p57
      %p59 = scmp.ne.s32.totalorder %s51, %s53
      %p60 = scmp.eq.s32.totalorder %s22, 1
      %p61 = por %p59, %p60
      %p62 = scmp.ne.s32.totalorder %s53, %s54
      %p63 = scmp.eq.s32.totalorder %s22, 0
      %p64 = por %p62, %p63
      %p65 = scmp.ne.s32.totalorder %s53, %s54
      %p66 = scmp.eq.s32.totalorder %s23, 1
      %p67 = por %p65, %p66
      %p69 = scmp.ne.s32.totalorder %s54, %s68
      %p70 = scmp.eq.s32.totalorder %s23, 0
      %p71 = por %p69, %p70
      %s73 = sadd.s32 %s72, 1
      %p76 = scmp.eq.s32.totalorder %s17, 1
      %p77 = scmp.ne.s32.totalorder %s72, %s74
      %p78 = scmp.eq.s32.totalorder %s17, 0
      %p79 = por %p77, %p78
      %p80 = scmp.ne.s32.totalorder %s72, %s74
      %p81 = scmp.eq.s32.totalorder %s22, 1
      %p82 = por %p80, %p81
      %p83 = scmp.ne.s32.totalorder %s74, %s75
      %p84 = scmp.eq.s32.totalorder %s22, 0
      %p85 = por %p83, %p84
      %p86 = scmp.ne.s32.totalorder %s74, %s75
      %p87 = scmp.eq.s32.totalorder %s23, 1
      %p88 = por %p86, %p87
      %p90 = scmp.ne.s32.totalorder %s75, %s89
      %p91 = scmp.eq.s32.totalorder %s23, 0
      %p92 = por %p90, %p91
      %s94 = sadd.s32 %s93, 1
      %p97 = scmp.eq.s32.totalorder %s17, 1
      %p98 = scmp.ne.s32.totalorder %s93, %s95
      %p99 = scmp.eq.s32.totalorder %s17, 0
      %p100 = por %p98, %p99
      %p101 = scmp.ne.s32.totalorder %s93, %s95
      %p102 = scmp.eq.s32.totalorder %s22, 1
      %p103 = por %p101, %p102
      %p104 = scmp.ne.s32.totalorder %s95, %s96
      %p105 = scmp.eq.s32.totalorder %s22, 0
      %p106 = por %p104, %p105
      %p107 = scmp.ne.s32.totalorder %s95, %s96
      %p108 = scmp.eq.s32.totalorder %s23, 1
      %p109 = por %p107, %p108
      %p111 = scmp.ne.s32.totalorder %s96, %s110
      %p112 = scmp.eq.s32.totalorder %s23, 0
      %p113 = por %p111, %p112
      %s115 = sadd.s32 %s114, 1
      %p118 = scmp.eq.s32.totalorder %s17, 1
      %p119 = scmp.ne.s32.totalorder %s114, %s116
      %p120 = scmp.eq.s32.totalorder %s17, 0
      %p121 = por %p119, %p120
      %p122 = scmp.ne.s32.totalorder %s114, %s116
      %p123 = scmp.eq.s32.totalorder %s22, 1
      %p124 = por %p122, %p123
      %p125 = scmp.ne.s32.totalorder %s116, %s117
      %p126 = scmp.eq.s32.totalorder %s22, 0
      %p127 = por %p125, %p126
      %p128 = scmp.ne.s32.totalorder %s116, %s117
      %p129 = scmp.eq.s32.totalorder %s23, 1
      %p130 = por %p128, %p129
      %p132 = scmp.ne.s32.totalorder %s117, %s131
      %p133 = scmp.eq.s32.totalorder %s23, 0
      %p134 = por %p132, %p133
      %s136 = sadd.s32 %s135, 1
      %p139 = scmp.eq.s32.totalorder %s17, 1
      %p140 = scmp.ne.s32.totalorder %s135, %s137
      %p141 = scmp.eq.s32.totalorder %s17, 0
      %p142 = por %p140, %p141
      %p143 = scmp.ne.s32.totalorder %s135, %s137
      %p144 = scmp.eq.s32.totalorder %s22, 1
      %p145 = por %p143, %p144
      %p146 = scmp.ne.s32.totalorder %s137, %s138
      %p147 = scmp.eq.s32.totalorder %s22, 0
      %p148 = por %p146, %p147
      %p149 = scmp.ne.s32.totalorder %s137, %s138
      %p150 = scmp.eq.s32.totalorder %s23, 1
      %p151 = por %p149, %p150
      %p153 = scmp.ne.s32.totalorder %s138, %s152
      %p154 = scmp.eq.s32.totalorder %s23, 0
      %p155 = por %p153, %p154
      %s157 = sadd.s32 %s156, 1
      %p160 = scmp.eq.s32.totalorder %s17, 1
      %p161 = scmp.ne.s32.totalorder %s156, %s158
      %p162 = scmp.eq.s32.totalorder %s17, 0
      %p163 = por %p161, %p162
      %p164 = scmp.ne.s32.totalorder %s156, %s158
      %p165 = scmp.eq.s32.totalorder %s22, 1
      %p166 = por %p164, %p165
      %p167 = scmp.ne.s32.totalorder %s158, %s159
      %p168 = scmp.eq.s32.totalorder %s22, 0
      %p169 = por %p167, %p168
      %p170 = scmp.ne.s32.totalorder %s158, %s159
      %p171 = scmp.eq.s32.totalorder %s23, 1
      %p172 = por %p170, %p171
      %p174 = scmp.ne.s32.totalorder %s159, %s173
      %p175 = scmp.eq.s32.totalorder %s23, 0
      %p176 = por %p174, %p175
      %s178 = sadd.s32 %s177, 1
      %p181 = scmp.eq.s32.totalorder %s17, 1
      %p182 = scmp.ne.s32.totalorder %s177, %s179
      %p183 = scmp.eq.s32.totalorder %s17, 0
      %p184 = por %p182, %p183
      %p185 = scmp.ne.s32.totalorder %s177, %s179
      %p186 = scmp.eq.s32.totalorder %s22, 1
      %p187 = por %p185, %p186
      %p188 = scmp.ne.s32.totalorder %s179, %s180
      %p189 = scmp.eq.s32.totalorder %s22, 0
      %p190 = por %p188, %p189
      %p191 = scmp.ne.s32.totalorder %s179, %s180
      %p192 = scmp.eq.s32.totalorder %s23, 1
      %p193 = por %p191, %p192
      %p195 = scmp.ne.s32.totalorder %s180, %s194
      %p196 = scmp.eq.s32.totalorder %s23, 0
      %p197 = por %p195, %p196
      %s199 = sadd.s32 %s198, 1
      %p202 = scmp.eq.s32.totalorder %s17, 1
      %p203 = scmp.ne.s32.totalorder %s198, %s200
      %p204 = scmp.eq.s32.totalorder %s17, 0
      %p205 = por %p203, %p204
      %p206 = scmp.ne.s32.totalorder %s198, %s200
      %p207 = scmp.eq.s32.totalorder %s22, 1
      %p208 = por %p206, %p207
      %p209 = scmp.ne.s32.totalorder %s200, %s201
      %p210 = scmp.eq.s32.totalorder %s22, 0
      %p211 = por %p209, %p210
      %p212 = scmp.ne.s32.totalorder %s200, %s201
      %p213 = scmp.eq.s32.totalorder %s23, 1
      %p214 = por %p212, %p213
      %p216 = scmp.ne.s32.totalorder %s201, %s215
      %p217 = scmp.eq.s32.totalorder %s23, 0
      %p218 = por %p216, %p217
      %s220 = sadd.s32 %s219, 1
      %p223 = scmp.eq.s32.totalorder %s17, 1
      %p224 = scmp.ne.s32.totalorder %s219, %s221
      %p225 = scmp.eq.s32.totalorder %s17, 0
      %p226 = por %p224, %p225
      %p227 = scmp.ne.s32.totalorder %s219, %s221
      %p228 = scmp.eq.s32.totalorder %s22, 1
      %p229 = por %p227, %p228
      %p230 = scmp.ne.s32.totalorder %s221, %s222
      %p231 = scmp.eq.s32.totalorder %s22, 0
      %p232 = por %p230, %p231
      %p233 = scmp.ne.s32.totalorder %s221, %s222
      %p234 = scmp.eq.s32.totalorder %s23, 1
      %p235 = por %p233, %p234
      %p237 = scmp.ne.s32.totalorder %s222, %s236
      %p238 = scmp.eq.s32.totalorder %s23, 0
      %p239 = por %p237, %p238
      %s240 = ssub.s32 %s17, %s24
      %p241 = scmp.eq.s32.totalorder %s240, 0
      %s243 = sadd.s32 %s242, 1
      %s244 = scalar_select %p241, %s242, %s243
      %p247 = pneg %p241
      %p248 = scmp.eq.s32.totalorder %s17, 1
      %p249 = por %p247, %p248
      %p250 = scmp.ne.s32.totalorder %s242, %s245
      %p251 = scmp.eq.s32.totalorder %s17, 0
      %p252 = por %p250, %p251
      %p253 = scmp.ne.s32.totalorder %s242, %s245
      %p254 = scmp.eq.s32.totalorder %s22, 1
      %p255 = por %p253, %p254
      %p256 = scmp.ne.s32.totalorder %s245, %s246
      %p257 = scmp.eq.s32.totalorder %s22, 0
      %p258 = por %p256, %p257
      %p259 = scmp.ne.s32.totalorder %s245, %s246
      %p260 = scmp.eq.s32.totalorder %s23, 1
      %p261 = por %p259, %p260
      %p263 = scmp.ne.s32.totalorder %s246, %s262
      %p264 = scmp.eq.s32.totalorder %s23, 0
      %p265 = por %p263, %p264
      %p266 = scmp.le.s32.totalorder 1, %s17
      %p267 = scmp.lt.s32.totalorder %s17, 3
      %p268 = pnand %p266, %p267
      %p269 = pneg %p268
      // Predicated region
      $region9: #{fc_transform_forward.1} parent=5 // pred_check
        _
      $region10: #{fc_transform_forward.1} parent=5 // pred_check_branch
        %271 = sbr.rel (%p268) target = $region12
      $region11: #{fc_transform_forward.1} parent=5 // pred_region
        %s272 = ssub.s32 %s17, 1
        // Predicated region
        $region13: #{fc_transform_forward.1} parent=11 // pred_check
          %p273 = pneg %p64
        $region14: #{fc_transform_forward.1} parent=11 // pred_check_branch
          %275 = sbr.rel (%p273) target = $region16
        $region15: #{fc_transform_forward.1} parent=11 // pred_region
          _
        $region16: #{fc_transform_forward.1} parent=11 // pred_fallthru
          _
        // Predicated region
        $region17: #{fc_transform_forward.1} parent=11 // pred_check
          %p276 = pneg %p85
        $region18: #{fc_transform_forward.1} parent=11 // pred_check_branch
          %278 = sbr.rel (%p276) target = $region20
        $region19: #{fc_transform_forward.1} parent=11 // pred_region
          _
        $region20: #{fc_transform_forward.1} parent=11 // pred_fallthru
          _
        // Predicated region
        $region21: #{fc_transform_forward.1} parent=11 // pred_check
          %p279 = pneg %p106
        $region22: #{fc_transform_forward.1} parent=11 // pred_check_branch
          %281 = sbr.rel (%p279) target = $region24
        $region23: #{fc_transform_forward.1} parent=11 // pred_region
          %283 = vsyncadd [#allocation3], 0
          %s284 = sshll.u32 %s3, 4
          %s285 = int_to_ptr.hbm [resolvable:$true] %s284
          %s286 = sshll.u32 [#allocation2], 4
          %s287 = int_to_ptr.vmem [resolvable:$true] %s286
          %292 = dma.hbm_to_vmem [thread:$0]  %s285, 1024, %s287, [#allocation3], 64, 64, 4
        $region24: #{fc_transform_forward.1} parent=11 // pred_fallthru
          _
        // Predicated region
        $region25: #{fc_transform_forward.1} parent=11 // pred_check
          %p293 = pneg %p127
        $region26: #{fc_transform_forward.1} parent=11 // pred_check_branch
          %295 = sbr.rel (%p293) target = $region28
        $region27: #{fc_transform_forward.1} parent=11 // pred_region
          _
        $region28: #{fc_transform_forward.1} parent=11 // pred_fallthru
          _
        // Predicated region
        $region29: #{fc_transform_forward.1} parent=11 // pred_check
          %p296 = pneg %p148
        $region30: #{fc_transform_forward.1} parent=11 // pred_check_branch
          %298 = sbr.rel (%p296) target = $region32
        $region31: #{fc_transform_forward.1} parent=11 // pred_region
          _
        $region32: #{fc_transform_forward.1} parent=11 // pred_fallthru
          _
        // Predicated region
        $region33: #{fc_transform_forward.1} parent=11 // pred_check
          %p299 = pneg %p169
        $region34: #{fc_transform_forward.1} parent=11 // pred_check_branch
          %301 = sbr.rel (%p299) target = $region36
        $region35: #{fc_transform_forward.1} parent=11 // pred_region
          _
        $region36: #{fc_transform_forward.1} parent=11 // pred_fallthru
          _
        // Predicated region
        $region37: #{fc_transform_forward.1} parent=11 // pred_check
          %p302 = pneg %p190
        $region38: #{fc_transform_forward.1} parent=11 // pred_check_branch
          %304 = sbr.rel (%p302) target = $region40
        $region39: #{fc_transform_forward.1} parent=11 // pred_region
          _
        $region40: #{fc_transform_forward.1} parent=11 // pred_fallthru
          _
        // Predicated region
        $region41: #{fc_transform_forward.1} parent=11 // pred_check
          %p305 = pneg %p211
        $region42: #{fc_transform_forward.1} parent=11 // pred_check_branch
          %307 = sbr.rel (%p305) target = $region44
        $region43: #{fc_transform_forward.1} parent=11 // pred_region
          _
        $region44: #{fc_transform_forward.1} parent=11 // pred_fallthru
          _
        // Predicated region
        $region45: #{fc_transform_forward.1} parent=11 // pred_check
          %p308 = pneg %p232
        $region46: #{fc_transform_forward.1} parent=11 // pred_check_branch
          %310 = sbr.rel (%p308) target = $region48
        $region47: #{fc_transform_forward.1} parent=11 // pred_region
          _
        $region48: #{fc_transform_forward.1} parent=11 // pred_fallthru
          _
      $region12: #{fc_transform_forward.1} parent=5 // pred_fallthru
        _
      %p311 = scmp.lt.s32.totalorder %s17, 2
      // Predicated region
      $region49: #{fc_transform_forward.1} parent=5 // pred_check
        %p312 = pneg %p311
      $region50: #{fc_transform_forward.1} parent=5 // pred_check_branch
        %314 = sbr.rel (%p312) target = $region52
      $region51: #{fc_transform_forward.1} parent=5 // pred_region
        // Predicated region
        $region53: #{fc_transform_forward.1} parent=51 // pred_check
          %p315 = pneg %p37
        $region54: #{fc_transform_forward.1} parent=51 // pred_check_branch
          %317 = sbr.rel (%p315) target = $region56
        $region55: #{fc_transform_forward.1} parent=51 // pred_region
          %p318 = scmp.lt.s32.totalorder %s17, 1
          %s319 = scalar_select %p318, %s17, 1
          %s320 = smul.addr %s319, 2
          %s321 = smul.addr %s320, 4
          %s322 = scalar_lea.vmem %s0, %s321
        $region56: #{fc_transform_forward.1} parent=51 // pred_fallthru
          _
      $region52: #{fc_transform_forward.1} parent=5 // pred_fallthru
        _
      %p323 = scmp.le.s32.totalorder 1, %s17
      %p324 = scmp.lt.s32.totalorder %s17, 3
      %p325 = pnand %p323, %p324
      %p326 = pneg %p325
      // Predicated region
      $region57: #{fc_transform_forward.1} parent=5 // pred_check
        _
      $region58: #{fc_transform_forward.1} parent=5 // pred_check_branch
        %328 = sbr.rel (%p325) target = $region60
      $region59: #{fc_transform_forward.1} parent=5 // pred_region
        %s329 = ssub.s32 %s17, 1
        // Predicated region
        $region61: #{fc_transform_forward.1} parent=59 // pred_check
          %p330 = pneg %p106
        $region62: #{fc_transform_forward.1} parent=59 // pred_check_branch
          %332 = sbr.rel (%p330) target = $region64
        $region63: #{fc_transform_forward.1} parent=59 // pred_region
          %334 = dma.done [#allocation3], 1024
        $region64: #{fc_transform_forward.1} parent=59 // pred_fallthru
          _
        %p335 = scmp.lt.s32.totalorder %s22, 1
        %s336 = scalar_select %p335, %s22, 1
        %s337 = smul.addr %s336, 2
        %s338 = smul.addr %s337, 4
        %s339 = scalar_lea.vmem %s0, %s338
        %p340 = pneg %p43
        %p341 = pneg %p40
        %p342 = pneg %p64
        %p343 = pneg %p61
        %p344 = pneg %p85
        %p345 = pneg %p82
        %p346 = pneg %p106
        %p347 = pneg %p103
        %p348 = pneg %p127
        %p349 = pneg %p124
        %p350 = pneg %p148
        %p351 = pneg %p145
        %p352 = pneg %p169
        %p353 = pneg %p166
        %p354 = pneg %p190
        %p355 = pneg %p187
        %p356 = pneg %p211
        %p357 = pneg %p208
        %p358 = pneg %p232
        %p359 = pneg %p229
        %p360 = pneg %p258
        %p361 = pneg %p255
        %p362 = scmp.lt.s32.totalorder %s22, 1
        %s363 = scalar_select %p362, %s22, 1
        %s364 = smul.addr %s363, 8
        %s365 = scalar_lea.vmem %s10, %s364
        %p366 = scmp.lt.s32.totalorder %s22, 1
        %s367 = scalar_select %p366, %s22, 1
        %s368 = smul.addr %s367, 2
        %s369 = smul.addr %s368, 4
        %s370 = scalar_lea.vmem %s0, %s369
        %p371 = scmp.lt.s32.totalorder %s22, 1
        %s372 = scalar_select %p371, %s22, 1
        %s373 = smul.addr %s372, 8
        %s374 = scalar_lea.vmem %s10, %s373
        %v375 = vld [vmem:[%s370] sm:$0xff]
        %377 = vst [vmem:[#allocation1] ss:$2 sm:$0xff] %v375
        %v378 = vld.sshfl [vmem:[#allocation1] sm:$0xff pattern:$0x75316420]
        %v379 = vld.sshfl [vmem:[#allocation1 + $0x8] sm:$0xff pattern:$0x75316420]
        %v382 = vpack.c.bf16 %v378, %v378
        %v383 = vpack.c.bf16 %v379, %v379
        %v384 = vld [vmem:[%s1] sm:$0xf]
        %v385 = vld [vmem:[%s1 + $0x4] sm:$0xf]
        %v386 = vld [vmem:[%s1 + $0x8] sm:$0xf]
        %v387 = vld [vmem:[%s1 + $0xc] sm:$0xf]
        %v388 = vld [vmem:[%s1 + $0x10] sm:$0xf]
        %v389 = vld [vmem:[%s1 + $0x14] sm:$0xf]
        %v390 = vld [vmem:[%s1 + $0x18] sm:$0xf]
        %v391 = vld [vmem:[%s1 + $0x1c] sm:$0xf]
        %v392 = vld [vmem:[%s1 + $0x20] sm:$0xf]
        %v393 = vld [vmem:[%s1 + $0x24] sm:$0xf]
        %v394 = vld [vmem:[%s1 + $0x28] sm:$0xf]
        %v395 = vld [vmem:[%s1 + $0x2c] sm:$0xf]
        %v396 = vld [vmem:[%s1 + $0x30] sm:$0xf]
        %v397 = vld [vmem:[%s1 + $0x34] sm:$0xf]
        %v398 = vld [vmem:[%s1 + $0x38] sm:$0xf]
        %v399 = vld [vmem:[%s1 + $0x3c] sm:$0xf]
        %v400 = vld [vmem:[%s1 + $0x40] sm:$0xf]
        %v401 = vld [vmem:[%s1 + $0x44] sm:$0xf]
        %v402 = vld [vmem:[%s1 + $0x48] sm:$0xf]
        %v403 = vld [vmem:[%s1 + $0x4c] sm:$0xf]
        %v404 = vld [vmem:[%s1 + $0x50] sm:$0xf]
        %v405 = vld [vmem:[%s1 + $0x54] sm:$0xf]
        %v406 = vld [vmem:[%s1 + $0x58] sm:$0xf]
        %v407 = vld [vmem:[%s1 + $0x5c] sm:$0xf]
        %v408 = vld [vmem:[%s1 + $0x60] sm:$0xf]
        %v409 = vld [vmem:[%s1 + $0x64] sm:$0xf]
        %v410 = vld [vmem:[%s1 + $0x68] sm:$0xf]
        %v411 = vld [vmem:[%s1 + $0x6c] sm:$0xf]
        %v412 = vld [vmem:[%s1 + $0x70] sm:$0xf]
        %v413 = vld [vmem:[%s1 + $0x74] sm:$0xf]
        %v414 = vld [vmem:[%s1 + $0x78] sm:$0xf]
        %v415 = vld [vmem:[%s1 + $0x7c] sm:$0xf]
        %v416 = vld [vmem:[%s2] sm:$0x1]
        %v418 = vperm.slane %v416, 0
        %v452 = vunpack.c.l.b16 %v384
        %v453 = vunpack.c.l.b16 %v385
        %v454 = vunpack.c.l.b16 %v386
        %v455 = vunpack.c.l.b16 %v387
        %v456 = vunpack.c.l.b16 %v388
        %v457 = vunpack.c.l.b16 %v389
        %v458 = vunpack.c.l.b16 %v390
        %v459 = vunpack.c.l.b16 %v391
        %v460 = vunpack.c.l.b16 %v392
        %v461 = vunpack.c.l.b16 %v393
        %v462 = vunpack.c.l.b16 %v394
        %v463 = vunpack.c.l.b16 %v395
        %v464 = vunpack.c.l.b16 %v396
        %v465 = vunpack.c.l.b16 %v397
        %v466 = vunpack.c.l.b16 %v398
        %v467 = vunpack.c.l.b16 %v399
        %v468 = vunpack.c.l.b16 %v400
        %v469 = vunpack.c.l.b16 %v401
        %v470 = vunpack.c.l.b16 %v402
        %v471 = vunpack.c.l.b16 %v403
        %v472 = vunpack.c.l.b16 %v404
        %v473 = vunpack.c.l.b16 %v405
        %v474 = vunpack.c.l.b16 %v406
        %v475 = vunpack.c.l.b16 %v407
        %v476 = vunpack.c.l.b16 %v408
        %v477 = vunpack.c.l.b16 %v409
        %v478 = vunpack.c.l.b16 %v410
        %v479 = vunpack.c.l.b16 %v411
        %v480 = vunpack.c.l.b16 %v412
        %v481 = vunpack.c.l.b16 %v413
        %v482 = vunpack.c.l.b16 %v414
        %v483 = vunpack.c.l.b16 %v415
        %v484 = vpack.c.b16 %v453, %v452
        %v485 = vpack.c.b16 %v455, %v454
        %v486 = vpack.c.b16 %v457, %v456
        %v487 = vpack.c.b16 %v459, %v458
        %v488 = vpack.c.b16 %v461, %v460
        %v489 = vpack.c.b16 %v463, %v462
        %v490 = vpack.c.b16 %v465, %v464
        %v491 = vpack.c.b16 %v467, %v466
        %v492 = vpack.c.b16 %v469, %v468
        %v493 = vpack.c.b16 %v471, %v470
        %v494 = vpack.c.b16 %v473, %v472
        %v495 = vpack.c.b16 %v475, %v474
        %v496 = vpack.c.b16 %v477, %v476
        %v497 = vpack.c.b16 %v479, %v478
        %v498 = vpack.c.b16 %v481, %v480
        %v499 = vpack.c.b16 %v483, %v482
        %516 = vmatpush.bf16.msra.mxu0 %v491
        %517 = vmatpush.bf16.msra.mxu0 %v490
        %518 = vmatpush.bf16.msra.mxu0 %v489
        %519 = vmatpush.bf16.msra.mxu0 %v488
        %520 = vmatpush.bf16.msra.mxu0 %v487
        %521 = vmatpush.bf16.msra.mxu0 %v486
        %522 = vmatpush.bf16.msra.mxu0 %v485
        %523 = vmatpush.bf16.msra.mxu0 %v484
        %524 = vmatmul.bf16.gmra.mxu0 %v382
        %v525 = vpop.f32.mrf.mxu0
        %v526 = vadd.f32 %v418, %v525
        %v527 = vpop.f32.mrf.mxu0
        %528 = vdwg.mxu0
        %529 = vmatpush.bf16.msra.mxu0 %v499
        %530 = vmatpush.bf16.msra.mxu0 %v498
        %531 = vmatpush.bf16.msra.mxu0 %v497
        %532 = vmatpush.bf16.msra.mxu0 %v496
        %533 = vmatpush.bf16.msra.mxu0 %v495
        %534 = vmatpush.bf16.msra.mxu0 %v494
        %535 = vmatpush.bf16.msra.mxu0 %v493
        %536 = vmatpush.bf16.msra.mxu0 %v492
        %537 = vmatmul.bf16.gmra.mxu0 %v383
        %v538 = vpop.f32.mrf.mxu0
        %v539 = vadd.f32 %v526, %v538
        %v540 = vpop.f32.mrf.mxu0
        %541 = vdwg.mxu0
        %v542 = vmax.f32 %v539, 0.0
        %v543 = vpack.c.bf16 %v542, %v542
        %v544 = vld [vmem:[#allocation2] sm:$0xf]
        %v545 = vld [vmem:[#allocation2 + $0x4] sm:$0xf]
        %v546 = vld [vmem:[#allocation2 + $0x8] sm:$0xf]
        %v547 = vld [vmem:[#allocation2 + $0xc] sm:$0xf]
        %v548 = vld [vmem:[#allocation2 + $0x10] sm:$0xf]
        %v549 = vld [vmem:[#allocation2 + $0x14] sm:$0xf]
        %v550 = vld [vmem:[#allocation2 + $0x18] sm:$0xf]
        %v551 = vld [vmem:[#allocation2 + $0x1c] sm:$0xf]
        %v552 = vld [vmem:[#allocation2 + $0x20] sm:$0xf]
        %v553 = vld [vmem:[#allocation2 + $0x24] sm:$0xf]
        %v554 = vld [vmem:[#allocation2 + $0x28] sm:$0xf]
        %v555 = vld [vmem:[#allocation2 + $0x2c] sm:$0xf]
        %v556 = vld [vmem:[#allocation2 + $0x30] sm:$0xf]
        %v557 = vld [vmem:[#allocation2 + $0x34] sm:$0xf]
        %v558 = vld [vmem:[#allocation2 + $0x38] sm:$0xf]
        %v559 = vld [vmem:[#allocation2 + $0x3c] sm:$0xf]
        %v560 = vld [vmem:[%s4] sm:$0x1]
        %v562 = vperm.slane %v560, 0
        %v580 = vunpack.c.l.b16 %v544
        %v581 = vunpack.c.l.b16 %v545
        %v582 = vunpack.c.l.b16 %v546
        %v583 = vunpack.c.l.b16 %v547
        %v584 = vunpack.c.l.b16 %v548
        %v585 = vunpack.c.l.b16 %v549
        %v586 = vunpack.c.l.b16 %v550
        %v587 = vunpack.c.l.b16 %v551
        %v588 = vunpack.c.l.b16 %v552
        %v589 = vunpack.c.l.b16 %v553
        %v590 = vunpack.c.l.b16 %v554
        %v591 = vunpack.c.l.b16 %v555
        %v592 = vunpack.c.l.b16 %v556
        %v593 = vunpack.c.l.b16 %v557
        %v594 = vunpack.c.l.b16 %v558
        %v595 = vunpack.c.l.b16 %v559
        %v596 = vpack.c.b16 %v581, %v580
        %v597 = vpack.c.b16 %v583, %v582
        %v598 = vpack.c.b16 %v585, %v584
        %v599 = vpack.c.b16 %v587, %v586
        %v600 = vpack.c.b16 %v589, %v588
        %v601 = vpack.c.b16 %v591, %v590
        %v602 = vpack.c.b16 %v593, %v592
        %v603 = vpack.c.b16 %v595, %v594
        %612 = vmatpush.bf16.msra.mxu0 %v603
        %613 = vmatpush.bf16.msra.mxu0 %v602
        %614 = vmatpush.bf16.msra.mxu0 %v601
        %615 = vmatpush.bf16.msra.mxu0 %v600
        %616 = vmatpush.bf16.msra.mxu0 %v599
        %617 = vmatpush.bf16.msra.mxu0 %v598
        %618 = vmatpush.bf16.msra.mxu0 %v597
        %619 = vmatpush.bf16.msra.mxu0 %v596
        %620 = vmatmul.bf16.gmra.mxu0 %v543
        %v621 = vpop.f32.mrf.mxu0
        %v622 = vadd.f32 %v562, %v621
        %v623 = vpop.f32.mrf.mxu0
        %624 = vdwg.mxu0
        %v625 = vmax.f32 %v622, 0.0
        %v626 = vld [vmem:[%s5] sm:$0xff]
        %v627 = vld [vmem:[%s6] sm:$0xff]
        %629 = vset.pattern.permute.xlu0 0
        %630 = vperm.xlu0 %629, %v627
        %v631 = vpop.permute.xlu0 %630
        %vm633 = vcmask 31744
        %v635 = vsel %vm633, %v626, 0
        %vm637 = vcmask 1043456
        %v639 = vsel %vm637, %v625, 0
        %641 = vmatpush.msra.mxu0 0.0
        %642 = vmatpush.msra.mxu0 0.0
        %643 = vmatpush.msra.mxu0 0.0
        %644 = vmatpush.msra.mxu0 0.0
        %645 = vmatpush.msra.mxu0 0.0
        %646 = vmatpush.msra.mxu0 0.0
        %647 = vmatpush.msra.mxu0 0.0
        %648 = vmatpush.msra.mxu0 0.0
        %649 = vmatpush.msra.mxu0 0.0
        %650 = vmatpush.msra.mxu0 0.0
        %651 = vmatpush.msra.mxu0 0.0
        %652 = vmatpush.msra.mxu0 0.0
        %653 = vmatpush.msra.mxu0 0.0
        %654 = vmatpush.msra.mxu0 0.0
        %655 = vmatpush.msra.mxu0 0.0
        %656 = vmatpush.msra.mxu0 %v639
        %657 = vmatmul.f32.gmra.mxu0 %v635
        %v658 = vpop.f32.mrf.mxu0
        %v659 = vadd.f32 %v631, %v658
        %660 = vdwg.mxu0
        %v661 = vmax.f32 %v659, 0.0
        %662 = vrot.lane.b32.xlu0 %v661, 17
        %v663 = vpop.permute.xlu0 %662
        %v664 = vld [vmem:[%s9] sm:$0x1]
        %v665 = vperm.slane %v664, 0
        %v666 = vmul.f32 %v663, %v665
        %667 = vrot.lane.b32.xlu0 %v661, 16
        %v668 = vpop.permute.xlu0 %667
        %v669 = vld [vmem:[%s9 + $0x1] sm:$0x1]
        %v670 = vperm.slane %v669, 0
        %v671 = vmul.f32 %v668, %v670
        %672 = vrot.lane.b32.xlu0 %v661, 15
        %v673 = vpop.permute.xlu0 %672
        %v674 = vld [vmem:[%s9 + $0x2] sm:$0x1]
        %v675 = vperm.slane %v674, 0
        %v676 = vmul.f32 %v673, %v675
        %677 = vrot.lane.b32.xlu0 %v661, 1
        %v678 = vpop.permute.xlu0 %677
        %v679 = vld [vmem:[%s9 + $0x3] sm:$0x1]
        %v680 = vperm.slane %v679, 0
        %v681 = vmul.f32 %v678, %v680
        %682 = vrot.lane.b32.xlu0 %v661, 127
        %v683 = vpop.permute.xlu0 %682
        %v684 = vld [vmem:[%s9 + $0x5] sm:$0x1]
        %v685 = vperm.slane %v684, 0
        %v686 = vmul.f32 %v683, %v685
        %687 = vrot.lane.b32.xlu0 %v661, 113
        %v688 = vpop.permute.xlu0 %687
        %v689 = vld [vmem:[%s9 + $0x6] sm:$0x1]
        %v690 = vperm.slane %v689, 0
        %v691 = vmul.f32 %v688, %v690
        %692 = vrot.lane.b32.xlu0 %v661, 112
        %v693 = vpop.permute.xlu0 %692
        %v694 = vld [vmem:[%s9 + $0x7] sm:$0x1]
        %v695 = vperm.slane %v694, 0
        %v696 = vmul.f32 %v693, %v695
        %697 = vrot.lane.b32.xlu0 %v661, 111
        %v698 = vpop.permute.xlu0 %697
        %v699 = vld [vmem:[%s9 + $0x8] sm:$0x1]
        %v700 = vperm.slane %v699, 0
        %v701 = vmul.f32 %v698, %v700
        %v702 = vld [vmem:[%s7] sm:$0xff]
        %v703 = vld [vmem:[%s8] sm:$0xff]
        %705 = vset.pattern.permute.xlu0 0
        %706 = vperm.xlu0 %705, %v703
        %v707 = vpop.permute.xlu0 %706
        %vm709 = vcmask 588800
        %v711 = vsel %vm709, %v702, 0
        %713 = vmatpush.msra.mxu0 0.0
        %714 = vmatpush.msra.mxu0 0.0
        %715 = vmatpush.msra.mxu0 0.0
        %716 = vmatpush.msra.mxu0 0.0
        %717 = vmatpush.msra.mxu0 0.0
        %718 = vmatpush.msra.mxu0 0.0
        %719 = vmatpush.msra.mxu0 0.0
        %720 = vmatpush.msra.mxu0 %v701
        %721 = vmatpush.msra.mxu0 %v696
        %722 = vmatpush.msra.mxu0 %v691
        %723 = vmatpush.msra.mxu0 %v686
        %724 = vmatpush.msra.mxu0 %v661
        %725 = vmatpush.msra.mxu0 %v681
        %726 = vmatpush.msra.mxu0 %v676
        %727 = vmatpush.msra.mxu0 %v671
        %728 = vmatpush.msra.mxu0 %v666
        %729 = vmatmul.f32.gmra.mxu0 %v711
        %v730 = vpop.f32.mrf.mxu0
        %v731 = vadd.f32 %v707, %v730
        %732 = vdwg.mxu0
        %v733 = vadd.f32 %v731, %v661
        %v734 = vmax.f32 %v733, 0.0
        %735 = vst [vmem:[%s374] sm:$0xff] %v734
        %p736 = scmp.lt.s32.totalorder %s22, 1
        %s737 = scalar_select %p736, %s22, 1
        %s738 = smul.addr %s737, 8
        %s739 = scalar_lea.vmem %s10, %s738
        // Predicated region
        $region65: #{fc_transform_forward.1} parent=59 // pred_check
          %p740 = pneg %p255
        $region66: #{fc_transform_forward.1} parent=59 // pred_check_branch
          %742 = sbr.rel (%p740) target = $region68
        $region67: #{fc_transform_forward.1} parent=59 // pred_region
          _
        $region68: #{fc_transform_forward.1} parent=59 // pred_fallthru
          _
      $region60: #{fc_transform_forward.1} parent=5 // pred_fallthru
        _
      %p743 = scmp.le.s32.totalorder 2, %s17
      // Predicated region
      $region69: #{fc_transform_forward.1} parent=5 // pred_check
        %p744 = pneg %p743
      $region70: #{fc_transform_forward.1} parent=5 // pred_check_branch
        %746 = sbr.rel (%p744) target = $region72
      $region71: #{fc_transform_forward.1} parent=5 // pred_region
        %s747 = ssub.s32 %s17, 2
        // Predicated region
        $region73: #{fc_transform_forward.1} parent=71 // pred_check
          %p748 = pneg %p261
        $region74: #{fc_transform_forward.1} parent=71 // pred_check_branch
          %750 = sbr.rel (%p748) target = $region76
        $region75: #{fc_transform_forward.1} parent=71 // pred_region
          %p751 = scmp.lt.s32.totalorder %s23, 1
          %s752 = scalar_select %p751, %s23, 1
          %s753 = smul.addr %s752, 8
          %s754 = scalar_lea.vmem %s10, %s753
        $region76: #{fc_transform_forward.1} parent=71 // pred_fallthru
          _
      $region72: #{fc_transform_forward.1} parent=5 // pred_fallthru
        _
    $region6: #{fc_transform_forward.1} parent=1 // loop_footer
      %s21 = sadd.s32 1, %s17
    $region7: #{fc_transform_forward.1} parent=1 // loop_footer_branch
      %16 = sbr.rel target = $region3
    $region8: #{fc_transform_forward.1} parent=1 // loop_exit
      _
    %755 = vsyncpa [#allocation3], 1
    %s756 = scalar_lea.sflag [#allocation3], 1
    %757 = vsyncpa %s756, 1

</llo_original>
